<compile_context>
chip_gen: v6e
topology: v6e:2x2x1
jax: 0.10.0
libtpu: 0.0.40
codegen_flags: <defaults>
</compile_context>

<pallas_src>
import jax
import jax.numpy as jnp
from jax.experimental import pallas as pl
from jax.experimental.pallas import tpu as pltpu

# TODO(synk): in the original service n_users / n_genres / n_languages come from
# MongoDB; fixed small constants here so the script is self-contained.
N_FACTORS = 20
N_USERS = 16
N_ITEMS = 16
N_GENRES = 5
N_LANGUAGES = 4
N_AGES = 100
N_GENDERS = 2

HIDDEN1 = 64
HIDDEN2 = 32
HIDDEN2_PAD = 40          # 32 real units + 1 constant-one unit (output bias) + pad to x8
IN_DIM = N_FACTORS * 6    # 120 (fc1 fan_in)

_TABLE_SIZES = (N_USERS, N_ITEMS, N_GENRES, N_LANGUAGES, N_AGES, N_GENDERS)
_OFFSETS = []
_acc = 0
for _n in _TABLE_SIZES:
    _OFFSETS.append(_acc)
    _acc += _n
_OFFSETS = tuple(_OFFSETS)
N_EMB_ROWS = _acc                       # 143
K_EMB = ((N_EMB_ROWS + 7) // 8) * 8     # 144; row 143 is the constant-one / bias row


def _round_up(x, m):
    return (x + m - 1) // m * m


# --------------------------------------------------------------------------- #
# Kernel
# --------------------------------------------------------------------------- #
def _ncf_fused_kernel(ids_ref, wf_hi_ref, wf_mid_ref, wf_lo_ref,
                      w2t_ref, b2_ref, w3_ref, o_ref):
    """Fused gather+concat+fc1 (one matmul) + fc2 + output, batch on lanes.

    ids_ref  : (6, TB) int32        per-feature row ids, table offsets pre-added
    wf_*_ref : (HIDDEN1, K_EMB) bf16 hi/mid/lo parts of (block_diag(tables)@fc1_w | b1)^T
    w2t_ref  : (HIDDEN2_PAD, HIDDEN1) f32
    b2_ref   : (HIDDEN2_PAD, 1) f32  row HIDDEN2 == 1.0 (constant-one unit)
    w3_ref   : (HIDDEN2_PAD, 1) f32  row HIDDEN2 == output bias
    o_ref    : (1, TB) f32           sigmoid scores, lane-dense
    """
    tb = ids_ref.shape[1]
    ids = ids_ref[...]                                               # (6, TB)

    # Multi-hot selector: OR'd boolean masks + one cast (mask math stays in
    # int/bool so it is cheap on v5e too; the final bf16 cast goes via f32).
    row = jax.lax.broadcasted_iota(jnp.int32, (K_EMB, tb), 0)
    hit = row == ids[0:1, :]
    for j in range(1, 6):
        hit = hit | (row == ids[j:j + 1, :])
    hit = hit | (row == (K_EMB - 1))                                 # constant-one row -> fc1 bias
    mh = hit.astype(jnp.float32).astype(jnp.bfloat16)                # 0/1 exact in bf16

    # Fused gather + concat + fc1: three single-pass bf16 MXU matmuls with f32
    # accumulation; hi+mid+lo reconstructs the f32 fused weight to ~2^-25 rel.
    h1 = jnp.maximum(
        jnp.dot(wf_hi_ref[...], mh, preferred_element_type=jnp.float32)
        + jnp.dot(wf_mid_ref[...], mh, preferred_element_type=jnp.float32)
        + jnp.dot(wf_lo_ref[...], mh, preferred_element_type=jnp.float32),
        0.0)                                                         # (HIDDEN1, TB)

    h2 = jnp.maximum(
        jnp.dot(w2t_ref[...], h1, preferred_element_type=jnp.float32) + b2_ref[...],
        0.0)                                                         # (HIDDEN2_PAD, TB)

    # Final 32 -> 1 layer on VPU + sublane reduce (XLU); constant-one row of h2
    # contributes the output bias.  Sigmoid lands on the EUP.
    logits = jnp.sum(h2 * w3_ref[...], axis=0, keepdims=True)        # (1, TB)
    o_ref[...] = jax.nn.sigmoid(logits)


# --------------------------------------------------------------------------- #
# Wrapper
# --------------------------------------------------------------------------- #
def _pick_tile(batch):
    """Lane-tile size + padded batch.

    Keeps >= 2 grid steps once the padded batch reaches 256 (so both v7x
    TensorCores get work via the "parallel" grid axis) and allows tiles up to
    2048 lanes to amortize the ~0.35us per-step overhead.  VMEM is not a
    constraint (~70 KB resident weights, ~2.5 MB activations at tb=2048).
    """
    b_pad = _round_up(max(batch, 1), 128)
    tb = min(2048, max(128, _round_up((b_pad + 1) // 2, 128)))
    b_pad = _round_up(b_pad, tb)
    return tb, b_pad


@jax.jit
def ncf_forward(kparams, user_id, item_id, genre_id, language_id, age, gender):
    """Forward pass matching NCFWithDemographics; returns (batch, 1) scores."""
    batch = user_id.shape[0]
    offsets = jnp.array(_OFFSETS, jnp.int32).reshape(6, 1)
    ids = jnp.stack(
        [user_id, item_id, genre_id, language_id, age, gender], axis=0
    ).astype(jnp.int32) + offsets                                    # (6, B), offsets folded in

    tb, b_pad = _pick_tile(batch)
    # Pad with -1: padded columns match no table row (only the constant-one
    # bias row), so they stay finite and are simply discarded below.
    ids = jnp.pad(ids, ((0, 0), (0, b_pad - batch)), constant_values=-1)

    def resident(shape):                                             # weights stay in VMEM
        return pl.BlockSpec(shape, lambda i: (0, 0))

    out = pl.pallas_call(
        _ncf_fused_kernel,
        out_shape=jax.ShapeDtypeStruct((1, b_pad), jnp.float32),
        grid=(b_pad // tb,),
        in_specs=[
            pl.BlockSpec((6, tb), lambda i: (0, i)),                 # ids: tiled over batch
            resident((HIDDEN1, K_EMB)),                              # fused table@fc1 (hi, bf16)
            resident((HIDDEN1, K_EMB)),                              # fused table@fc1 (mid, bf16)
            resident((HIDDEN1, K_EMB)),                              # fused table@fc1 (lo, bf16)
            resident((HIDDEN2_PAD, HIDDEN1)),                        # fc2^T (padded)
            resident((HIDDEN2_PAD, 1)),                              # fc2 bias (+ const-1 row)
            resident((HIDDEN2_PAD, 1)),                              # output weight (+ bias row)
        ],
        out_specs=pl.BlockSpec((1, tb), lambda i: (0, i)),           # lane-dense output
        compiler_params=pltpu.CompilerParams(
            dimension_semantics=("parallel",)),                      # both TCs on v7x
    )(ids, kparams["wf_hi"], kparams["wf_mid"], kparams["wf_lo"],
      kparams["w2t"], kparams["b2"], kparams["w3"])

    return out[0, :batch].reshape(batch, 1)


# --------------------------------------------------------------------------- #
# Parameters
# --------------------------------------------------------------------------- #
def init_params(key):
    """PyTorch-style init: Embedding ~ N(0,1), Linear ~ U(+-1/sqrt(fan_in))."""
    keys = jax.random.split(key, 12)

    def emb(k, n, d):
        return jax.random.normal(k, (n, d), jnp.float32)

    def linear(kw, kb, fan_in, fan_out):
        bound = 1.0 / jnp.sqrt(fan_in)
        w = jax.random.uniform(kw, (fan_in, fan_out), jnp.float32, -bound, bound)
        b = jax.random.uniform(kb, (1, fan_out), jnp.float32, -bound, bound)
        return w, b

    params = {
        "user_embedding": emb(keys[0], N_USERS, N_FACTORS),
        "item_embedding": emb(keys[1], N_ITEMS, N_FACTORS),
        "genre_embedding": emb(keys[2], N_GENRES, N_FACTORS),
        "language_embedding": emb(keys[3], N_LANGUAGES, N_FACTORS),
        "age_embedding": emb(keys[4], N_AGES, N_FACTORS),
        "gender_embedding": emb(keys[5], N_GENDERS, N_FACTORS),
    }
    params["fc1_w"], params["fc1_b"] = linear(keys[6], keys[7], IN_DIM, HIDDEN1)
    params["fc2_w"], params["fc2_b"] = linear(keys[8], keys[9], HIDDEN1, HIDDEN2)
    params["out_w"], params["out_b"] = linear(keys[10], keys[11], HIDDEN2, 1)
    return params


def _split_bf16_parts(x):
    """Split f32 x into three bfloat16 arrays whose sum ~= x (~2^-25 rel)."""
    hi = x.astype(jnp.bfloat16)
    r1 = x - hi.astype(jnp.float32)
    mid = r1.astype(jnp.bfloat16)
    lo = (r1 - mid.astype(jnp.float32)).astype(jnp.bfloat16)
    return hi, mid, lo


def prepare_kernel_params(params):
    """One-time transform of module parameters into kernel-ready operands."""
    tables = (
        params["user_embedding"], params["item_embedding"], params["genre_embedding"],
        params["language_embedding"], params["age_embedding"], params["gender_embedding"],
    )
    # Fold gather + concat + fc1 offline:
    #   Wfused[off_j + r, :] = tables[j][r, :] @ fc1_w[j*F:(j+1)*F, :]
    #   Wfused[K_EMB-1, :]   = fc1 bias (selected by the constant-one mh row)
    wf = jnp.zeros((K_EMB, HIDDEN1), jnp.float32)
    for j, (tab, off) in enumerate(zip(tables, _OFFSETS)):
        blk = jnp.dot(tab, params["fc1_w"][j * N_FACTORS:(j + 1) * N_FACTORS, :],
                      precision=jax.lax.Precision.HIGHEST)
        wf = wf.at[off:off + tab.shape[0], :].set(blk)
    wf = wf.at[K_EMB - 1, :].set(params["fc1_b"].reshape(-1))
    wf_hi, wf_mid, wf_lo = _split_bf16_parts(wf.T)                   # (HIDDEN1, K_EMB) bf16

    w2t = jnp.zeros((HIDDEN2_PAD, HIDDEN1), jnp.float32).at[:HIDDEN2, :].set(params["fc2_w"].T)
    b2 = jnp.zeros((HIDDEN2_PAD, 1), jnp.float32).at[:HIDDEN2, 0].set(params["fc2_b"].reshape(-1))
    b2 = b2.at[HIDDEN2, 0].set(1.0)                                  # constant-one unit
    w3 = jnp.zeros((HIDDEN2_PAD, 1), jnp.float32).at[:HIDDEN2, 0].set(params["out_w"].reshape(-1))
    w3 = w3.at[HIDDEN2, 0].set(params["out_b"][0, 0])                # fold output bias

    return {"wf_hi": wf_hi, "wf_mid": wf_mid, "wf_lo": wf_lo,
            "w2t": w2t, "b2": b2, "w3": w3}


# --------------------------------------------------------------------------- #
# Pure-JAX reference (f32, HIGHEST precision) for the sanity check
# --------------------------------------------------------------------------- #
def _reference_forward(params, user_id, item_id, genre_id, language_id, age, gender):
    hp = jax.lax.Precision.HIGHEST
    x = jnp.concatenate(
        [
            jnp.take(params["user_embedding"], user_id, axis=0),
            jnp.take(params["item_embedding"], item_id, axis=0),
            jnp.take(params["genre_embedding"], genre_id, axis=0),
            jnp.take(params["language_embedding"], language_id, axis=0),
            jnp.take(params["age_embedding"], age, axis=0),
            jnp.take(params["gender_embedding"], gender, axis=0),
        ],
        axis=1,
    )
    h1 = jax.nn.relu(jnp.dot(x, params["fc1_w"], precision=hp) + params["fc1_b"])
    h2 = jax.nn.relu(jnp.dot(h1, params["fc2_w"], precision=hp) + params["fc2_b"])
    return jax.nn.sigmoid(jnp.dot(h2, params["out_w"], precision=hp) + params["out_b"])


# --------------------------------------------------------------------------- #
# Main
# --------------------------------------------------------------------------- #
if __name__ == "__main__":
    root = jax.random.PRNGKey(0)
    pkey, dkey = jax.random.split(root)
    params = init_params(pkey)
    kparams = prepare_kernel_params(params)

    batch = 8
    k1, k2, k3, k4, k5, k6 = jax.random.split(dkey, 6)
    user_id = jax.random.randint(k1, (batch,), 0, N_USERS, jnp.int32)
    item_id = jax.random.randint(k2, (batch,), 0, N_ITEMS, jnp.int32)
    genre_id = jax.random.randint(k3, (batch,), 0, N_GENRES, jnp.int32)
    language_id = jax.random.randint(k4, (batch,), 0, N_LANGUAGES, jnp.int32)
    age = jax.random.randint(k5, (batch,), 0, N_AGES, jnp.int32)
    gender = jax.random.randint(k6, (batch,), 0, N_GENDERS, jnp.int32)

    out = ncf_forward(kparams, user_id, item_id, genre_id, language_id, age, gender)
    out = jax.block_until_ready(out)

    ref = _reference_forward(params, user_id, item_id, genre_id, language_id, age, gender)
    assert out.shape == (batch, 1)
    max_err = float(jnp.max(jnp.abs(out - ref)))
    # 2e-3 tolerance: the fused fc1 path is ~f32-exact; the small fc2 dot runs
    # at Mosaic's default f32 matmul precision, which may be bf16-pass based.
    assert max_err < 2e-3, f"kernel/reference mismatch: max abs err = {max_err}"

    print("KERNEL_OK")
</pallas_src>

<mosaic_0001>
module attributes {stable_mosaic.version = 11 : i64} {
  func.func @_ncf_fused_kernel(%arg0: i32, %arg1: memref<6x128xi32, #tpu.memory_space<vmem>>, %arg2: memref<64x144xbf16, #tpu.memory_space<vmem>>, %arg3: memref<64x144xbf16, #tpu.memory_space<vmem>>, %arg4: memref<64x144xbf16, #tpu.memory_space<vmem>>, %arg5: memref<40x64xf32, #tpu.memory_space<vmem>>, %arg6: memref<40x1xf32, #tpu.memory_space<vmem>>, %arg7: memref<40x1xf32, #tpu.memory_space<vmem>>, %arg8: memref<1x128xf32, #tpu.memory_space<vmem>>) attributes {dimension_semantics = [#tpu.dimension_semantics<parallel>], iteration_bounds = array<i64: 1>, scalar_prefetch = 0 : i64, scratch_operands = 0 : i64, tpu.core_type = #tpu.core_type<tc>, window_params = [{transform_indices = @transform_0, window_bounds = array<i64: 6, 128>}, {pipeline_mode = #tpu.pipeline_mode<synchronous>, transform_indices = @transform_1, window_bounds = array<i64: 64, 144>}, {pipeline_mode = #tpu.pipeline_mode<synchronous>, transform_indices = @transform_2, window_bounds = array<i64: 64, 144>}, {pipeline_mode = #tpu.pipeline_mode<synchronous>, transform_indices = @transform_3, window_bounds = array<i64: 64, 144>}, {pipeline_mode = #tpu.pipeline_mode<synchronous>, transform_indices = @transform_4, window_bounds = array<i64: 40, 64>}, {pipeline_mode = #tpu.pipeline_mode<synchronous>, transform_indices = @transform_5, window_bounds = array<i64: 40, 1>}, {pipeline_mode = #tpu.pipeline_mode<synchronous>, transform_indices = @transform_6, window_bounds = array<i64: 40, 1>}, {transform_indices = @transform_7, window_bounds = array<i64: 1, 128>}]} {
    %c0 = arith.constant 0 : index
    %c0_0 = arith.constant 0 : index
    %0 = vector.load %arg1[%c0, %c0_0] : memref<6x128xi32, #tpu.memory_space<vmem>>, vector<6x128xi32>
    %1 = tpu.iota {dimensions = array<i32: 0>} : vector<144x128xi32>
    %2 = vector.extract_strided_slice %0 {offsets = [0, 0], sizes = [1, 128], strides = [1, 1]} : vector<6x128xi32> to vector<1x128xi32>
    %3 = vector.broadcast %2 : vector<1x128xi32> to vector<144x128xi32>
    %4 = arith.cmpi eq, %1, %3 : vector<144x128xi32>
    %5 = vector.extract_strided_slice %0 {offsets = [1, 0], sizes = [1, 128], strides = [1, 1]} : vector<6x128xi32> to vector<1x128xi32>
    %6 = vector.broadcast %5 : vector<1x128xi32> to vector<144x128xi32>
    %7 = arith.cmpi eq, %1, %6 : vector<144x128xi32>
    %8 = arith.ori %4, %7 : vector<144x128xi1>
    %9 = vector.extract_strided_slice %0 {offsets = [2, 0], sizes = [1, 128], strides = [1, 1]} : vector<6x128xi32> to vector<1x128xi32>
    %10 = vector.broadcast %9 : vector<1x128xi32> to vector<144x128xi32>
    %11 = arith.cmpi eq, %1, %10 : vector<144x128xi32>
    %12 = arith.ori %8, %11 : vector<144x128xi1>
    %13 = vector.extract_strided_slice %0 {offsets = [3, 0], sizes = [1, 128], strides = [1, 1]} : vector<6x128xi32> to vector<1x128xi32>
    %14 = vector.broadcast %13 : vector<1x128xi32> to vector<144x128xi32>
    %15 = arith.cmpi eq, %1, %14 : vector<144x128xi32>
    %16 = arith.ori %12, %15 : vector<144x128xi1>
    %17 = vector.extract_strided_slice %0 {offsets = [4, 0], sizes = [1, 128], strides = [1, 1]} : vector<6x128xi32> to vector<1x128xi32>
    %18 = vector.broadcast %17 : vector<1x128xi32> to vector<144x128xi32>
    %19 = arith.cmpi eq, %1, %18 : vector<144x128xi32>
    %20 = arith.ori %16, %19 : vector<144x128xi1>
    %21 = vector.extract_strided_slice %0 {offsets = [5, 0], sizes = [1, 128], strides = [1, 1]} : vector<6x128xi32> to vector<1x128xi32>
    %22 = vector.broadcast %21 : vector<1x128xi32> to vector<144x128xi32>
    %23 = arith.cmpi eq, %1, %22 : vector<144x128xi32>
    %24 = arith.ori %20, %23 : vector<144x128xi1>
    %c143_i32 = arith.constant 143 : i32
    %25 = vector.broadcast %c143_i32 : i32 to vector<144x128xi32>
    %26 = arith.cmpi eq, %1, %25 : vector<144x128xi32>
    %27 = arith.ori %24, %26 : vector<144x128xi1>
    %28 = arith.extui %27 : vector<144x128xi1> to vector<144x128xi32>
    %29 = arith.sitofp %28 : vector<144x128xi32> to vector<144x128xf32>
    %30 = arith.truncf %29 : vector<144x128xf32> to vector<144x128xbf16>
    %c0_1 = arith.constant 0 : index
    %c0_2 = arith.constant 0 : index
    %31 = vector.load %arg2[%c0_1, %c0_2] : memref<64x144xbf16, #tpu.memory_space<vmem>>, vector<64x144xbf16>
    %cst = arith.constant dense<0.000000e+00> : vector<64x128xf32>
    %32 = tpu.matmul %31, %30, %cst {dimension_numbers = #tpu.dot_dimension_numbers<[1], [0], [0], [1], [0, 0, 1, 1], [], []>} : vector<64x144xbf16>, vector<144x128xbf16>, vector<64x128xf32> -> vector<64x128xf32>
    %c0_3 = arith.constant 0 : index
    %c0_4 = arith.constant 0 : index
    %33 = vector.load %arg3[%c0_3, %c0_4] : memref<64x144xbf16, #tpu.memory_space<vmem>>, vector<64x144xbf16>
    %cst_5 = arith.constant dense<0.000000e+00> : vector<64x128xf32>
    %34 = tpu.matmul %33, %30, %cst_5 {dimension_numbers = #tpu.dot_dimension_numbers<[1], [0], [0], [1], [0, 0, 1, 1], [], []>} : vector<64x144xbf16>, vector<144x128xbf16>, vector<64x128xf32> -> vector<64x128xf32>
    %35 = arith.addf %32, %34 : vector<64x128xf32>
    %c0_6 = arith.constant 0 : index
    %c0_7 = arith.constant 0 : index
    %36 = vector.load %arg4[%c0_6, %c0_7] : memref<64x144xbf16, #tpu.memory_space<vmem>>, vector<64x144xbf16>
    %cst_8 = arith.constant dense<0.000000e+00> : vector<64x128xf32>
    %37 = tpu.matmul %36, %30, %cst_8 {dimension_numbers = #tpu.dot_dimension_numbers<[1], [0], [0], [1], [0, 0, 1, 1], [], []>} : vector<64x144xbf16>, vector<144x128xbf16>, vector<64x128xf32> -> vector<64x128xf32>
    %38 = arith.addf %35, %37 : vector<64x128xf32>
    %cst_9 = arith.constant 0.000000e+00 : f32
    %39 = vector.broadcast %cst_9 : f32 to vector<64x128xf32>
    %40 = arith.maximumf %38, %39 : vector<64x128xf32>
    %c0_10 = arith.constant 0 : index
    %c0_11 = arith.constant 0 : index
    %41 = vector.load %arg5[%c0_10, %c0_11] : memref<40x64xf32, #tpu.memory_space<vmem>>, vector<40x64xf32>
    %cst_12 = arith.constant dense<0.000000e+00> : vector<40x128xf32>
    %42 = tpu.matmul %41, %40, %cst_12 {dimension_numbers = #tpu.dot_dimension_numbers<[1], [0], [0], [1], [0, 0, 1, 1], [], []>} : vector<40x64xf32>, vector<64x128xf32>, vector<40x128xf32> -> vector<40x128xf32>
    %c0_13 = arith.constant 0 : index
    %c0_14 = arith.constant 0 : index
    %43 = vector.load %arg6[%c0_13, %c0_14] : memref<40x1xf32, #tpu.memory_space<vmem>>, vector<40x1xf32>
    %44 = vector.broadcast %43 : vector<40x1xf32> to vector<40x128xf32>
    %45 = arith.addf %42, %44 : vector<40x128xf32>
    %cst_15 = arith.constant 0.000000e+00 : f32
    %46 = vector.broadcast %cst_15 : f32 to vector<40x128xf32>
    %47 = arith.maximumf %45, %46 : vector<40x128xf32>
    %c0_16 = arith.constant 0 : index
    %c0_17 = arith.constant 0 : index
    %48 = vector.load %arg7[%c0_16, %c0_17] : memref<40x1xf32, #tpu.memory_space<vmem>>, vector<40x1xf32>
    %49 = vector.broadcast %48 : vector<40x1xf32> to vector<40x128xf32>
    %50 = arith.mulf %47, %49 : vector<40x128xf32>
    %cst_18 = arith.constant dense<0.000000e+00> : vector<128xf32>
    %51 = vector.multi_reduction <add>, %50, %cst_18 [0] : vector<40x128xf32> to vector<128xf32>
    %52 = vector.shape_cast %51 : vector<128xf32> to vector<1x128xf32>
    %53 = arith.negf %52 : vector<1x128xf32>
    %54 = math.exp %53 : vector<1x128xf32>
    %cst_19 = arith.constant 1.000000e+00 : f32
    %55 = vector.broadcast %cst_19 : f32 to vector<1x128xf32>
    %56 = arith.addf %55, %54 : vector<1x128xf32>
    %57 = arith.divf %55, %56 : vector<1x128xf32>
    %c0_20 = arith.constant 0 : index
    %c0_21 = arith.constant 0 : index
    %58 = vector.load %arg8[%c0_20, %c0_21] : memref<1x128xf32, #tpu.memory_space<vmem>>, vector<1x128xf32>
    tpu.vector_store %arg8[%c0_20, %c0_21], %57 {strides = array<i32>} : memref<1x128xf32, #tpu.memory_space<vmem>>, vector<1x128xf32>,
    return
  }
  func.func @transform_0(%arg0: i32) -> (i32, i32) {
    %c0_i32 = arith.constant 0 : i32
    %c0_i32_0 = arith.constant 0 : i32
    return %c0_i32, %arg0 : i32, i32
  }
  func.func @transform_1(%arg0: i32) -> (i32, i32) {
    %c0_i32 = arith.constant 0 : i32
    %c0_i32_0 = arith.constant 0 : i32
    %c0_i32_1 = arith.constant 0 : i32
    return %c0_i32, %c0_i32_0 : i32, i32
  }
  func.func @transform_2(%arg0: i32) -> (i32, i32) {
    %c0_i32 = arith.constant 0 : i32
    %c0_i32_0 = arith.constant 0 : i32
    %c0_i32_1 = arith.constant 0 : i32
    return %c0_i32, %c0_i32_0 : i32, i32
  }
  func.func @transform_3(%arg0: i32) -> (i32, i32) {
    %c0_i32 = arith.constant 0 : i32
    %c0_i32_0 = arith.constant 0 : i32
    %c0_i32_1 = arith.constant 0 : i32
    return %c0_i32, %c0_i32_0 : i32, i32
  }
  func.func @transform_4(%arg0: i32) -> (i32, i32) {
    %c0_i32 = arith.constant 0 : i32
    %c0_i32_0 = arith.constant 0 : i32
    %c0_i32_1 = arith.constant 0 : i32
    return %c0_i32, %c0_i32_0 : i32, i32
  }
  func.func @transform_5(%arg0: i32) -> (i32, i32) {
    %c0_i32 = arith.constant 0 : i32
    %c0_i32_0 = arith.constant 0 : i32
    %c0_i32_1 = arith.constant 0 : i32
    return %c0_i32, %c0_i32_0 : i32, i32
  }
  func.func @transform_6(%arg0: i32) -> (i32, i32) {
    %c0_i32 = arith.constant 0 : i32
    %c0_i32_0 = arith.constant 0 : i32
    %c0_i32_1 = arith.constant 0 : i32
    return %c0_i32, %c0_i32_0 : i32, i32
  }
  func.func @transform_7(%arg0: i32) -> (i32, i32) {
    %c0_i32 = arith.constant 0 : i32
    %c0_i32_0 = arith.constant 0 : i32
    return %c0_i32, %arg0 : i32, i32
  }
}

</mosaic_0001>

<llo_original>
// kernel: ncf_forward.1
$region0: #{ncf_forward.1}
  #allocation0 [shape = 'u32[]', space=smem, size = 0x4, offset = 0x4, fixed_abs, tag = 'smem constant byte address 0x4 - core index']
  #allocation1 [shape = 'u32[144,128]{1,0:T(1,128)}', space=vmem, size = 0x12000, scoped, tag = 'internal scratch']
  %s0 = inlined_call_operand.vmem [shape: s32[6,128], index: 0, kind: input, shape index: {}]
  %s1 = inlined_call_operand.vmem [shape: bf16[64,144], index: 1, kind: input, shape index: {}]
  %s2 = inlined_call_operand.vmem [shape: bf16[64,144], index: 2, kind: input, shape index: {}]
  %s3 = inlined_call_operand.hbm [shape: bf16[64,144], index: 3, kind: input, shape index: {}]
  %s4 = inlined_call_operand.hbm [shape: f32[40,64], index: 4, kind: input, shape index: {}]
  %s5 = inlined_call_operand.vmem [shape: f32[40,1], index: 5, kind: input, shape index: {}]
  %s6 = inlined_call_operand.vmem [shape: f32[40,1], index: 6, kind: input, shape index: {}]
  %s7 = inlined_call_operand.vmem [shape: f32[1,128], index: 7, kind: output, shape index: {}]
  %s8 = sld [smem:[#allocation0]]
  $region46: #{ncf_forward.1} parent=0
    _
  %s10 = ssub.s32 1, %s8
  %s11 = scalar_select 0, %s10, %s8
  $region1: #{ncf_forward.1} parent=0
    #allocation2 [shape = 'u8[32768]{0}', space=vmem, size = 0x8000, scoped, tag = 'input window, operand 3, single buffered']
    #allocation3 [shape = 's32[1]{0}', space=sflag, size = 0x4, scoped, tag = 'scoped memory for ncf_forward.1']
    #allocation4 [shape = 'u8[20480]{0}', space=vmem, size = 0x5000, scoped, tag = 'input window, operand 4, single buffered']
    #allocation5 [shape = 's32[1]{0}', space=sflag, size = 0x4, scoped, tag = 'scoped memory for ncf_forward.1']
    %12 = vsyncpa [#allocation3], 0
    %13 = vsyncpa [#allocation5], 0
    // Predicated region
    $region2: #{ncf_forward.1} parent=1 // pred_check
      _
    $region3: #{ncf_forward.1} parent=1 // pred_check_branch
      %15 = sbr.rel (0) target = $region5
    $region4: #{ncf_forward.1} parent=1 // pred_region
      _
    $region5: #{ncf_forward.1} parent=1 // pred_fallthru
      _
    // Predicated region
    $region6: #{ncf_forward.1} parent=1 // pred_check
      _
    $region7: #{ncf_forward.1} parent=1 // pred_check_branch
      %17 = sbr.rel (0) target = $region9
    $region8: #{ncf_forward.1} parent=1 // pred_region
      _
    $region9: #{ncf_forward.1} parent=1 // pred_fallthru
      _
    // Predicated region
    $region10: #{ncf_forward.1} parent=1 // pred_check
      _
    $region11: #{ncf_forward.1} parent=1 // pred_check_branch
      %19 = sbr.rel (0) target = $region13
    $region12: #{ncf_forward.1} parent=1 // pred_region
      _
    $region13: #{ncf_forward.1} parent=1 // pred_fallthru
      _
    // Predicated region
    $region14: #{ncf_forward.1} parent=1 // pred_check
      _
    $region15: #{ncf_forward.1} parent=1 // pred_check_branch
      %21 = sbr.rel (0) target = $region17
    $region16: #{ncf_forward.1} parent=1 // pred_region
      %s23 = ssub.s32 1024, 1024
      %24 = vsyncadd [#allocation3], %s23
      %s25 = sshll.u32 [#allocation2], 4
      %s26 = int_to_ptr.vmem [resolvable:$true] %s25
      %31 = dma.hbm_to_vmem [thread:$0]  %s3, 1024, %s26, [#allocation3], 128, 128, 8
    $region17: #{ncf_forward.1} parent=1 // pred_fallthru
      _
    // Predicated region
    $region18: #{ncf_forward.1} parent=1 // pred_check
      _
    $region19: #{ncf_forward.1} parent=1 // pred_check_branch
      %33 = sbr.rel (0) target = $region21
    $region20: #{ncf_forward.1} parent=1 // pred_region
      %s35 = ssub.s32 640, 640
      %36 = vsyncadd [#allocation5], %s35
      %s37 = sshll.u32 [#allocation4], 4
      %s38 = int_to_ptr.vmem [resolvable:$true] %s37
      %43 = dma.hbm_to_vmem [thread:$0]  %s4, 640, %s38, [#allocation5], 128, 128, 8
    $region21: #{ncf_forward.1} parent=1 // pred_fallthru
      _
    // Predicated region
    $region22: #{ncf_forward.1} parent=1 // pred_check
      _
    $region23: #{ncf_forward.1} parent=1 // pred_check_branch
      %45 = sbr.rel (0) target = $region25
    $region24: #{ncf_forward.1} parent=1 // pred_region
      _
    $region25: #{ncf_forward.1} parent=1 // pred_fallthru
      _
    // Predicated region
    $region26: #{ncf_forward.1} parent=1 // pred_check
      _
    $region27: #{ncf_forward.1} parent=1 // pred_check_branch
      %47 = sbr.rel (0) target = $region29
    $region28: #{ncf_forward.1} parent=1 // pred_region
      _
    $region29: #{ncf_forward.1} parent=1 // pred_fallthru
      _
    // Predicated region
    $region30: #{ncf_forward.1} parent=1 // pred_check
      _
    $region31: #{ncf_forward.1} parent=1 // pred_check_branch
      %49 = sbr.rel (0) target = $region33
    $region32: #{ncf_forward.1} parent=1 // pred_region
      %50 = dma.done [#allocation3], 1024
    $region33: #{ncf_forward.1} parent=1 // pred_fallthru
      _
    // Predicated region
    $region34: #{ncf_forward.1} parent=1 // pred_check
      _
    $region35: #{ncf_forward.1} parent=1 // pred_check_branch
      %52 = sbr.rel (0) target = $region37
    $region36: #{ncf_forward.1} parent=1 // pred_region
      %53 = dma.done [#allocation5], 640
    $region37: #{ncf_forward.1} parent=1 // pred_fallthru
      _
    %v55 = vld [vmem:[%s0] sm:$0x3f]
    %v56 = vlaneseq
    %v57 = vshrl.u32 %v56, 7
    %v58 = vadd.s32 %v57, 8
    %v59 = vadd.s32 %v57, 16
    %v60 = vadd.s32 %v57, 24
    %v61 = vadd.s32 %v57, 32
    %v62 = vadd.s32 %v57, 40
    %v63 = vadd.s32 %v57, 48
    %v64 = vadd.s32 %v57, 56
    %v65 = vadd.s32 %v57, 64
    %v66 = vadd.s32 %v57, 72
    %v67 = vadd.s32 %v57, 80
    %v68 = vadd.s32 %v57, 88
    %v69 = vadd.s32 %v57, 96
    %v70 = vadd.s32 %v57, 104
    %v71 = vadd.s32 %v57, 112
    %v72 = vadd.s32 %v57, 120
    %v73 = vadd.s32 %v57, 128
    %v74 = vadd.s32 %v57, 136
    %v75 = vlaneseq
    %v76 = vshrl.u32 %v75, 7
    %v77 = vsub.s32 0, %v76
    %v78 = vrot.slane %v55, %v77
    %vm79 = vcmp.eq.s32.totalorder %v57, %v78
    %vm80 = vcmp.eq.s32.totalorder %v58, %v78
    %vm81 = vcmp.eq.s32.totalorder %v59, %v78
    %vm82 = vcmp.eq.s32.totalorder %v60, %v78
    %vm83 = vcmp.eq.s32.totalorder %v61, %v78
    %vm84 = vcmp.eq.s32.totalorder %v62, %v78
    %vm85 = vcmp.eq.s32.totalorder %v63, %v78
    %vm86 = vcmp.eq.s32.totalorder %v64, %v78
    %vm87 = vcmp.eq.s32.totalorder %v65, %v78
    %vm88 = vcmp.eq.s32.totalorder %v66, %v78
    %vm89 = vcmp.eq.s32.totalorder %v67, %v78
    %vm90 = vcmp.eq.s32.totalorder %v68, %v78
    %vm91 = vcmp.eq.s32.totalorder %v69, %v78
    %vm92 = vcmp.eq.s32.totalorder %v70, %v78
    %vm93 = vcmp.eq.s32.totalorder %v71, %v78
    %vm94 = vcmp.eq.s32.totalorder %v72, %v78
    %vm95 = vcmp.eq.s32.totalorder %v73, %v78
    %vm96 = vcmp.eq.s32.totalorder %v74, %v78
    %v97 = vlaneseq
    %v98 = vshrl.u32 %v97, 7
    %v99 = vsub.s32 1, %v98
    %v100 = vrot.slane %v55, %v99
    %vm101 = vcmp.eq.s32.totalorder %v57, %v100
    %vm102 = vcmp.eq.s32.totalorder %v58, %v100
    %vm103 = vcmp.eq.s32.totalorder %v59, %v100
    %vm104 = vcmp.eq.s32.totalorder %v60, %v100
    %vm105 = vcmp.eq.s32.totalorder %v61, %v100
    %vm106 = vcmp.eq.s32.totalorder %v62, %v100
    %vm107 = vcmp.eq.s32.totalorder %v63, %v100
    %vm108 = vcmp.eq.s32.totalorder %v64, %v100
    %vm109 = vcmp.eq.s32.totalorder %v65, %v100
    %vm110 = vcmp.eq.s32.totalorder %v66, %v100
    %vm111 = vcmp.eq.s32.totalorder %v67, %v100
    %vm112 = vcmp.eq.s32.totalorder %v68, %v100
    %vm113 = vcmp.eq.s32.totalorder %v69, %v100
    %vm114 = vcmp.eq.s32.totalorder %v70, %v100
    %vm115 = vcmp.eq.s32.totalorder %v71, %v100
    %vm116 = vcmp.eq.s32.totalorder %v72, %v100
    %vm117 = vcmp.eq.s32.totalorder %v73, %v100
    %vm118 = vcmp.eq.s32.totalorder %v74, %v100
    %vm119 = vmor %vm79, %vm101
    %vm120 = vmor %vm80, %vm102
    %vm121 = vmor %vm81, %vm103
    %vm122 = vmor %vm82, %vm104
    %vm123 = vmor %vm83, %vm105
    %vm124 = vmor %vm84, %vm106
    %vm125 = vmor %vm85, %vm107
    %vm126 = vmor %vm86, %vm108
    %vm127 = vmor %vm87, %vm109
    %vm128 = vmor %vm88, %vm110
    %vm129 = vmor %vm89, %vm111
    %vm130 = vmor %vm90, %vm112
    %vm131 = vmor %vm91, %vm113
    %vm132 = vmor %vm92, %vm114
    %vm133 = vmor %vm93, %vm115
    %vm134 = vmor %vm94, %vm116
    %vm135 = vmor %vm95, %vm117
    %vm136 = vmor %vm96, %vm118
    %v137 = vlaneseq
    %v138 = vshrl.u32 %v137, 7
    %v139 = vsub.s32 2, %v138
    %v140 = vrot.slane %v55, %v139
    %vm141 = vcmp.eq.s32.totalorder %v57, %v140
    %vm142 = vcmp.eq.s32.totalorder %v58, %v140
    %vm143 = vcmp.eq.s32.totalorder %v59, %v140
    %vm144 = vcmp.eq.s32.totalorder %v60, %v140
    %vm145 = vcmp.eq.s32.totalorder %v61, %v140
    %vm146 = vcmp.eq.s32.totalorder %v62, %v140
    %vm147 = vcmp.eq.s32.totalorder %v63, %v140
    %vm148 = vcmp.eq.s32.totalorder %v64, %v140
    %vm149 = vcmp.eq.s32.totalorder %v65, %v140
    %vm150 = vcmp.eq.s32.totalorder %v66, %v140
    %vm151 = vcmp.eq.s32.totalorder %v67, %v140
    %vm152 = vcmp.eq.s32.totalorder %v68, %v140
    %vm153 = vcmp.eq.s32.totalorder %v69, %v140
    %vm154 = vcmp.eq.s32.totalorder %v70, %v140
    %vm155 = vcmp.eq.s32.totalorder %v71, %v140
    %vm156 = vcmp.eq.s32.totalorder %v72, %v140
    %vm157 = vcmp.eq.s32.totalorder %v73, %v140
    %vm158 = vcmp.eq.s32.totalorder %v74, %v140
    %vm159 = vmor %vm119, %vm141
    %vm160 = vmor %vm120, %vm142
    %vm161 = vmor %vm121, %vm143
    %vm162 = vmor %vm122, %vm144
    %vm163 = vmor %vm123, %vm145
    %vm164 = vmor %vm124, %vm146
    %vm165 = vmor %vm125, %vm147
    %vm166 = vmor %vm126, %vm148
    %vm167 = vmor %vm127, %vm149
    %vm168 = vmor %vm128, %vm150
    %vm169 = vmor %vm129, %vm151
    %vm170 = vmor %vm130, %vm152
    %vm171 = vmor %vm131, %vm153
    %vm172 = vmor %vm132, %vm154
    %vm173 = vmor %vm133, %vm155
    %vm174 = vmor %vm134, %vm156
    %vm175 = vmor %vm135, %vm157
    %vm176 = vmor %vm136, %vm158
    %v177 = vlaneseq
    %v178 = vshrl.u32 %v177, 7
    %v179 = vsub.s32 3, %v178
    %v180 = vrot.slane %v55, %v179
    %vm181 = vcmp.eq.s32.totalorder %v57, %v180
    %vm182 = vcmp.eq.s32.totalorder %v58, %v180
    %vm183 = vcmp.eq.s32.totalorder %v59, %v180
    %vm184 = vcmp.eq.s32.totalorder %v60, %v180
    %vm185 = vcmp.eq.s32.totalorder %v61, %v180
    %vm186 = vcmp.eq.s32.totalorder %v62, %v180
    %vm187 = vcmp.eq.s32.totalorder %v63, %v180
    %vm188 = vcmp.eq.s32.totalorder %v64, %v180
    %vm189 = vcmp.eq.s32.totalorder %v65, %v180
    %vm190 = vcmp.eq.s32.totalorder %v66, %v180
    %vm191 = vcmp.eq.s32.totalorder %v67, %v180
    %vm192 = vcmp.eq.s32.totalorder %v68, %v180
    %vm193 = vcmp.eq.s32.totalorder %v69, %v180
    %vm194 = vcmp.eq.s32.totalorder %v70, %v180
    %vm195 = vcmp.eq.s32.totalorder %v71, %v180
    %vm196 = vcmp.eq.s32.totalorder %v72, %v180
    %vm197 = vcmp.eq.s32.totalorder %v73, %v180
    %vm198 = vcmp.eq.s32.totalorder %v74, %v180
    %vm199 = vmor %vm159, %vm181
    %vm200 = vmor %vm160, %vm182
    %vm201 = vmor %vm161, %vm183
    %vm202 = vmor %vm162, %vm184
    %vm203 = vmor %vm163, %vm185
    %vm204 = vmor %vm164, %vm186
    %vm205 = vmor %vm165, %vm187
    %vm206 = vmor %vm166, %vm188
    %vm207 = vmor %vm167, %vm189
    %vm208 = vmor %vm168, %vm190
    %vm209 = vmor %vm169, %vm191
    %vm210 = vmor %vm170, %vm192
    %vm211 = vmor %vm171, %vm193
    %vm212 = vmor %vm172, %vm194
    %vm213 = vmor %vm173, %vm195
    %vm214 = vmor %vm174, %vm196
    %vm215 = vmor %vm175, %vm197
    %vm216 = vmor %vm176, %vm198
    %v217 = vlaneseq
    %v218 = vshrl.u32 %v217, 7
    %v219 = vsub.s32 4, %v218
    %v220 = vrot.slane %v55, %v219
    %vm221 = vcmp.eq.s32.totalorder %v57, %v220
    %vm222 = vcmp.eq.s32.totalorder %v58, %v220
    %vm223 = vcmp.eq.s32.totalorder %v59, %v220
    %vm224 = vcmp.eq.s32.totalorder %v60, %v220
    %vm225 = vcmp.eq.s32.totalorder %v61, %v220
    %vm226 = vcmp.eq.s32.totalorder %v62, %v220
    %vm227 = vcmp.eq.s32.totalorder %v63, %v220
    %vm228 = vcmp.eq.s32.totalorder %v64, %v220
    %vm229 = vcmp.eq.s32.totalorder %v65, %v220
    %vm230 = vcmp.eq.s32.totalorder %v66, %v220
    %vm231 = vcmp.eq.s32.totalorder %v67, %v220
    %vm232 = vcmp.eq.s32.totalorder %v68, %v220
    %vm233 = vcmp.eq.s32.totalorder %v69, %v220
    %vm234 = vcmp.eq.s32.totalorder %v70, %v220
    %vm235 = vcmp.eq.s32.totalorder %v71, %v220
    %vm236 = vcmp.eq.s32.totalorder %v72, %v220
    %vm237 = vcmp.eq.s32.totalorder %v73, %v220
    %vm238 = vcmp.eq.s32.totalorder %v74, %v220
    %vm239 = vmor %vm199, %vm221
    %vm240 = vmor %vm200, %vm222
    %vm241 = vmor %vm201, %vm223
    %vm242 = vmor %vm202, %vm224
    %vm243 = vmor %vm203, %vm225
    %vm244 = vmor %vm204, %vm226
    %vm245 = vmor %vm205, %vm227
    %vm246 = vmor %vm206, %vm228
    %vm247 = vmor %vm207, %vm229
    %vm248 = vmor %vm208, %vm230
    %vm249 = vmor %vm209, %vm231
    %vm250 = vmor %vm210, %vm232
    %vm251 = vmor %vm211, %vm233
    %vm252 = vmor %vm212, %vm234
    %vm253 = vmor %vm213, %vm235
    %vm254 = vmor %vm214, %vm236
    %vm255 = vmor %vm215, %vm237
    %vm256 = vmor %vm216, %vm238
    %v257 = vlaneseq
    %v258 = vshrl.u32 %v257, 7
    %v259 = vsub.s32 5, %v258
    %v260 = vrot.slane %v55, %v259
    %vm261 = vcmp.eq.s32.totalorder %v57, %v260
    %vm262 = vcmp.eq.s32.totalorder %v58, %v260
    %vm263 = vcmp.eq.s32.totalorder %v59, %v260
    %vm264 = vcmp.eq.s32.totalorder %v60, %v260
    %vm265 = vcmp.eq.s32.totalorder %v61, %v260
    %vm266 = vcmp.eq.s32.totalorder %v62, %v260
    %vm267 = vcmp.eq.s32.totalorder %v63, %v260
    %vm268 = vcmp.eq.s32.totalorder %v64, %v260
    %vm269 = vcmp.eq.s32.totalorder %v65, %v260
    %vm270 = vcmp.eq.s32.totalorder %v66, %v260
    %vm271 = vcmp.eq.s32.totalorder %v67, %v260
    %vm272 = vcmp.eq.s32.totalorder %v68, %v260
    %vm273 = vcmp.eq.s32.totalorder %v69, %v260
    %vm274 = vcmp.eq.s32.totalorder %v70, %v260
    %vm275 = vcmp.eq.s32.totalorder %v71, %v260
    %vm276 = vcmp.eq.s32.totalorder %v72, %v260
    %vm277 = vcmp.eq.s32.totalorder %v73, %v260
    %vm278 = vcmp.eq.s32.totalorder %v74, %v260
    %vm279 = vmor %vm239, %vm261
    %vm280 = vmor %vm240, %vm262
    %vm281 = vmor %vm241, %vm263
    %vm282 = vmor %vm242, %vm264
    %vm283 = vmor %vm243, %vm265
    %vm284 = vmor %vm244, %vm266
    %vm285 = vmor %vm245, %vm267
    %vm286 = vmor %vm246, %vm268
    %vm287 = vmor %vm247, %vm269
    %vm288 = vmor %vm248, %vm270
    %vm289 = vmor %vm249, %vm271
    %vm290 = vmor %vm250, %vm272
    %vm291 = vmor %vm251, %vm273
    %vm292 = vmor %vm252, %vm274
    %vm293 = vmor %vm253, %vm275
    %vm294 = vmor %vm254, %vm276
    %vm295 = vmor %vm255, %vm277
    %vm296 = vmor %vm256, %vm278
    %vm297 = vcmp.eq.s32.totalorder %v57, 143
    %vm298 = vcmp.eq.s32.totalorder %v58, 143
    %vm299 = vcmp.eq.s32.totalorder %v59, 143
    %vm300 = vcmp.eq.s32.totalorder %v60, 143
    %vm301 = vcmp.eq.s32.totalorder %v61, 143
    %vm302 = vcmp.eq.s32.totalorder %v62, 143
    %vm303 = vcmp.eq.s32.totalorder %v63, 143
    %vm304 = vcmp.eq.s32.totalorder %v64, 143
    %vm305 = vcmp.eq.s32.totalorder %v65, 143
    %vm306 = vcmp.eq.s32.totalorder %v66, 143
    %vm307 = vcmp.eq.s32.totalorder %v67, 143
    %vm308 = vcmp.eq.s32.totalorder %v68, 143
    %vm309 = vcmp.eq.s32.totalorder %v69, 143
    %vm310 = vcmp.eq.s32.totalorder %v70, 143
    %vm311 = vcmp.eq.s32.totalorder %v71, 143
    %vm312 = vcmp.eq.s32.totalorder %v72, 143
    %vm313 = vcmp.eq.s32.totalorder %v73, 143
    %vm314 = vcmp.eq.s32.totalorder %v74, 143
    %vm315 = vmor %vm279, %vm297
    %vm316 = vmor %vm280, %vm298
    %vm317 = vmor %vm281, %vm299
    %vm318 = vmor %vm282, %vm300
    %vm319 = vmor %vm283, %vm301
    %vm320 = vmor %vm284, %vm302
    %vm321 = vmor %vm285, %vm303
    %vm322 = vmor %vm286, %vm304
    %vm323 = vmor %vm287, %vm305
    %vm324 = vmor %vm288, %vm306
    %vm325 = vmor %vm289, %vm307
    %vm326 = vmor %vm290, %vm308
    %vm327 = vmor %vm291, %vm309
    %vm328 = vmor %vm292, %vm310
    %vm329 = vmor %vm293, %vm311
    %vm330 = vmor %vm294, %vm312
    %vm331 = vmor %vm295, %vm313
    %vm332 = vmor %vm296, %vm314
    %v333 = vsel %vm315, 1, 0
    %v334 = vsel %vm316, 1, 0
    %v335 = vsel %vm317, 1, 0
    %v336 = vsel %vm318, 1, 0
    %v337 = vsel %vm319, 1, 0
    %v338 = vsel %vm320, 1, 0
    %v339 = vsel %vm321, 1, 0
    %v340 = vsel %vm322, 1, 0
    %v341 = vsel %vm323, 1, 0
    %v342 = vsel %vm324, 1, 0
    %v343 = vsel %vm325, 1, 0
    %v344 = vsel %vm326, 1, 0
    %v345 = vsel %vm327, 1, 0
    %v346 = vsel %vm328, 1, 0
    %v347 = vsel %vm329, 1, 0
    %v348 = vsel %vm330, 1, 0
    %v349 = vsel %vm331, 1, 0
    %v350 = vsel %vm332, 1, 0
    %v351 = vcvt.s32.f32 %v333
    %v352 = vcvt.s32.f32 %v334
    %v353 = vcvt.s32.f32 %v335
    %v354 = vcvt.s32.f32 %v336
    %v355 = vcvt.s32.f32 %v337
    %v356 = vcvt.s32.f32 %v338
    %v357 = vcvt.s32.f32 %v339
    %v358 = vcvt.s32.f32 %v340
    %v359 = vcvt.s32.f32 %v341
    %v360 = vcvt.s32.f32 %v342
    %v361 = vcvt.s32.f32 %v343
    %v362 = vcvt.s32.f32 %v344
    %v363 = vcvt.s32.f32 %v345
    %v364 = vcvt.s32.f32 %v346
    %v365 = vcvt.s32.f32 %v347
    %v366 = vcvt.s32.f32 %v348
    %v367 = vcvt.s32.f32 %v349
    %v368 = vcvt.s32.f32 %v350
    %v369 = vpack.c.bf16 %v352, %v351
    %v370 = vpack.c.bf16 %v354, %v353
    %v371 = vpack.c.bf16 %v356, %v355
    %v372 = vpack.c.bf16 %v358, %v357
    %v373 = vpack.c.bf16 %v360, %v359
    %v374 = vpack.c.bf16 %v362, %v361
    %v375 = vpack.c.bf16 %v364, %v363
    %v376 = vpack.c.bf16 %v366, %v365
    %v377 = vpack.c.bf16 %v368, %v367
    %v378 = vld [vmem:[%s1] sm:$0xff]
    %v379 = vld [vmem:[%s1 + $0x8] sm:$0xff]
    %v380 = vld [vmem:[%s1 + $0x10] sm:$0xff]
    %v381 = vld [vmem:[%s1 + $0x18] sm:$0xff]
    %v382 = vld [vmem:[%s1 + $0x20] sm:$0xff]
    %v383 = vld [vmem:[%s1 + $0x28] sm:$0xff]
    %v384 = vld [vmem:[%s1 + $0x30] sm:$0xff]
    %v385 = vld [vmem:[%s1 + $0x38] sm:$0xff]
    %v386 = vld [vmem:[%s2] sm:$0xff]
    %v387 = vld [vmem:[%s2 + $0x8] sm:$0xff]
    %v388 = vld [vmem:[%s2 + $0x10] sm:$0xff]
    %v389 = vld [vmem:[%s2 + $0x18] sm:$0xff]
    %v390 = vld [vmem:[%s2 + $0x20] sm:$0xff]
    %v391 = vld [vmem:[%s2 + $0x28] sm:$0xff]
    %v392 = vld [vmem:[%s2 + $0x30] sm:$0xff]
    %v393 = vld [vmem:[%s2 + $0x38] sm:$0xff]
    %v402 = vunpack.c.l.b16 %v386
    %v403 = vunpack.c.h.b16 %v386
    %v404 = vunpack.c.l.b16 %v387
    %v405 = vunpack.c.h.b16 %v387
    %v406 = vunpack.c.l.b16 %v388
    %v407 = vunpack.c.h.b16 %v388
    %v408 = vunpack.c.l.b16 %v389
    %v409 = vunpack.c.h.b16 %v389
    %v410 = vunpack.c.l.b16 %v390
    %v411 = vunpack.c.h.b16 %v390
    %v412 = vunpack.c.l.b16 %v391
    %v413 = vunpack.c.h.b16 %v391
    %v414 = vunpack.c.l.b16 %v392
    %v415 = vunpack.c.h.b16 %v392
    %v416 = vunpack.c.l.b16 %v393
    %v417 = vunpack.c.h.b16 %v393
    %v418 = vpack.c.b16 %v404, %v402
    %v419 = vpack.c.b16 %v405, %v403
    %v420 = vpack.c.b16 %v408, %v406
    %v421 = vpack.c.b16 %v409, %v407
    %v422 = vpack.c.b16 %v412, %v410
    %v423 = vpack.c.b16 %v413, %v411
    %v424 = vpack.c.b16 %v416, %v414
    %v425 = vpack.c.b16 %v417, %v415
    %vm430 = vcmask 130048
    %v432 = vsel %vm430, %v419, 0
    %v435 = vsel %vm430, %v421, 0
    %v438 = vsel %vm430, %v423, 0
    %v441 = vsel %vm430, %v425, 0
    %443 = vmatprep.subr.bf16.mxu0 0
    %444 = vmatpush1.bf16.msra.mxu0 %v376
    %445 = vmatprep.subr.bf16.mxu0 0
    %446 = vmatpush1.bf16.msra.mxu0 %v375
    %447 = vmatprep.subr.bf16.mxu0 0
    %448 = vmatpush1.bf16.msra.mxu0 %v374
    %449 = vmatprep.subr.bf16.mxu0 0
    %450 = vmatpush1.bf16.msra.mxu0 %v373
    %451 = vmatprep.subr.bf16.mxu0 0
    %452 = vmatpush1.bf16.msra.mxu0 %v372
    %453 = vmatprep.subr.bf16.mxu0 0
    %454 = vmatpush1.bf16.msra.mxu0 %v371
    %455 = vmatprep.subr.bf16.mxu0 0
    %456 = vmatpush1.bf16.msra.mxu0 %v370
    %457 = vmatprep.subr.bf16.mxu0 0
    %458 = vmatpush1.bf16.msra.mxu0 %v369
    %459 = vmatprep.subr.bf16.mxu0 0
    %460 = vmatpush2.bf16.msra.mxu0 0
    %461 = vmatprep.subr.bf16.mxu0 0
    %462 = vmatpush2.bf16.msra.mxu0 0
    %463 = vmatprep.subr.bf16.mxu0 0
    %464 = vmatpush2.bf16.msra.mxu0 0
    %465 = vmatprep.subr.bf16.mxu0 0
    %466 = vmatpush2.bf16.msra.mxu0 0
    %467 = vmatprep.subr.bf16.mxu0 0
    %468 = vmatpush2.bf16.msra.mxu0 0
    %469 = vmatprep.subr.bf16.mxu0 0
    %470 = vmatpush2.bf16.msra.mxu0 0
    %471 = vmatprep.subr.bf16.mxu0 0
    %472 = vmatpush2.bf16.msra.mxu0 0
    %473 = vmatprep.subr.bf16.mxu0 0
    %474 = vmatpush2.bf16.msra.mxu0 %v377
    %475 = vmatprep.mubr.bf16.mxu0 %v432
    %476 = vmatmul.mubr.bf16.gmra.mxu0 %v418
    %v477 = vpop.f32.mrf.mxu0
    %v478 = vadd.f32 0.0, %v477
    %v479 = vpop.f32.mrf.mxu0
    %v480 = vpop.f32.mrf.mxu0
    %v481 = vadd.f32 0.0, %v480
    %v482 = vpop.f32.mrf.mxu0
    %483 = vmatprep.mubr.bf16.mxu0 %v435
    %484 = vmatmul.mubr.bf16.gmra.mxu0 %v420
    %v485 = vpop.f32.mrf.mxu0
    %v486 = vadd.f32 0.0, %v485
    %v487 = vpop.f32.mrf.mxu0
    %v488 = vpop.f32.mrf.mxu0
    %v489 = vadd.f32 0.0, %v488
    %v490 = vpop.f32.mrf.mxu0
    %491 = vmatprep.mubr.bf16.mxu0 %v438
    %492 = vmatmul.mubr.bf16.gmra.mxu0 %v422
    %v493 = vpop.f32.mrf.mxu0
    %v494 = vadd.f32 0.0, %v493
    %v495 = vpop.f32.mrf.mxu0
    %v496 = vpop.f32.mrf.mxu0
    %v497 = vadd.f32 0.0, %v496
    %v498 = vpop.f32.mrf.mxu0
    %499 = vmatprep.mubr.bf16.mxu0 %v441
    %500 = vmatmul.mubr.bf16.gmra.mxu0 %v424
    %v501 = vpop.f32.mrf.mxu0
    %v502 = vadd.f32 0.0, %v501
    %v503 = vpop.f32.mrf.mxu0
    %v504 = vpop.f32.mrf.mxu0
    %v505 = vadd.f32 0.0, %v504
    %v506 = vpop.f32.mrf.mxu0
    %507 = vdwg.mxu0
    %v516 = vunpack.c.l.b16 %v378
    %v517 = vunpack.c.h.b16 %v378
    %v518 = vunpack.c.l.b16 %v379
    %v519 = vunpack.c.h.b16 %v379
    %v520 = vunpack.c.l.b16 %v380
    %v521 = vunpack.c.h.b16 %v380
    %v522 = vunpack.c.l.b16 %v381
    %v523 = vunpack.c.h.b16 %v381
    %v524 = vunpack.c.l.b16 %v382
    %v525 = vunpack.c.h.b16 %v382
    %v526 = vunpack.c.l.b16 %v383
    %v527 = vunpack.c.h.b16 %v383
    %v528 = vunpack.c.l.b16 %v384
    %v529 = vunpack.c.h.b16 %v384
    %v530 = vunpack.c.l.b16 %v385
    %v531 = vunpack.c.h.b16 %v385
    %v532 = vpack.c.b16 %v518, %v516
    %v533 = vpack.c.b16 %v519, %v517
    %v534 = vpack.c.b16 %v522, %v520
    %v535 = vpack.c.b16 %v523, %v521
    %v536 = vpack.c.b16 %v526, %v524
    %v537 = vpack.c.b16 %v527, %v525
    %v538 = vpack.c.b16 %v530, %v528
    %v539 = vpack.c.b16 %v531, %v529
    %v545 = vsel %vm430, %v533, 0
    %v548 = vsel %vm430, %v535, 0
    %v551 = vsel %vm430, %v537, 0
    %v554 = vsel %vm430, %v539, 0
    %556 = vmatprep.subr.bf16.mxu0 0
    %557 = vmatpush1.bf16.msra.mxu0 %v376
    %558 = vmatprep.subr.bf16.mxu0 0
    %559 = vmatpush1.bf16.msra.mxu0 %v375
    %560 = vmatprep.subr.bf16.mxu0 0
    %561 = vmatpush1.bf16.msra.mxu0 %v374
    %562 = vmatprep.subr.bf16.mxu0 0
    %563 = vmatpush1.bf16.msra.mxu0 %v373
    %564 = vmatprep.subr.bf16.mxu0 0
    %565 = vmatpush1.bf16.msra.mxu0 %v372
    %566 = vmatprep.subr.bf16.mxu0 0
    %567 = vmatpush1.bf16.msra.mxu0 %v371
    %568 = vmatprep.subr.bf16.mxu0 0
    %569 = vmatpush1.bf16.msra.mxu0 %v370
    %570 = vmatprep.subr.bf16.mxu0 0
    %571 = vmatpush1.bf16.msra.mxu0 %v369
    %572 = vmatprep.subr.bf16.mxu0 0
    %573 = vmatpush2.bf16.msra.mxu0 0
    %574 = vmatprep.subr.bf16.mxu0 0
    %575 = vmatpush2.bf16.msra.mxu0 0
    %576 = vmatprep.subr.bf16.mxu0 0
    %577 = vmatpush2.bf16.msra.mxu0 0
    %578 = vmatprep.subr.bf16.mxu0 0
    %579 = vmatpush2.bf16.msra.mxu0 0
    %580 = vmatprep.subr.bf16.mxu0 0
    %581 = vmatpush2.bf16.msra.mxu0 0
    %582 = vmatprep.subr.bf16.mxu0 0
    %583 = vmatpush2.bf16.msra.mxu0 0
    %584 = vmatprep.subr.bf16.mxu0 0
    %585 = vmatpush2.bf16.msra.mxu0 0
    %586 = vmatprep.subr.bf16.mxu0 0
    %587 = vmatpush2.bf16.msra.mxu0 %v377
    %588 = vmatprep.mubr.bf16.mxu0 %v545
    %589 = vmatmul.mubr.bf16.gmra.mxu0 %v532
    %v590 = vpop.f32.mrf.mxu0
    %v591 = vadd.f32 %v478, %v590
    %v592 = vpop.f32.mrf.mxu0
    %v593 = vpop.f32.mrf.mxu0
    %v594 = vadd.f32 %v481, %v593
    %v595 = vpop.f32.mrf.mxu0
    %596 = vmatprep.mubr.bf16.mxu0 %v548
    %597 = vmatmul.mubr.bf16.gmra.mxu0 %v534
    %v598 = vpop.f32.mrf.mxu0
    %v599 = vadd.f32 %v486, %v598
    %v600 = vpop.f32.mrf.mxu0
    %v601 = vpop.f32.mrf.mxu0
    %v602 = vadd.f32 %v489, %v601
    %v603 = vpop.f32.mrf.mxu0
    %604 = vmatprep.mubr.bf16.mxu0 %v551
    %605 = vmatmul.mubr.bf16.gmra.mxu0 %v536
    %v606 = vpop.f32.mrf.mxu0
    %v607 = vadd.f32 %v494, %v606
    %v608 = vpop.f32.mrf.mxu0
    %v609 = vpop.f32.mrf.mxu0
    %v610 = vadd.f32 %v497, %v609
    %v611 = vpop.f32.mrf.mxu0
    %612 = vmatprep.mubr.bf16.mxu0 %v554
    %613 = vmatmul.mubr.bf16.gmra.mxu0 %v538
    %v614 = vpop.f32.mrf.mxu0
    %v615 = vadd.f32 %v502, %v614
    %v616 = vpop.f32.mrf.mxu0
    %v617 = vpop.f32.mrf.mxu0
    %v618 = vadd.f32 %v505, %v617
    %v619 = vpop.f32.mrf.mxu0
    %620 = vdwg.mxu0
    %v621 = vld [vmem:[#allocation2] sm:$0xff]
    %v622 = vld [vmem:[#allocation2 + $0x8] sm:$0xff]
    %v623 = vld [vmem:[#allocation2 + $0x10] sm:$0xff]
    %v624 = vld [vmem:[#allocation2 + $0x18] sm:$0xff]
    %v625 = vld [vmem:[#allocation2 + $0x20] sm:$0xff]
    %v626 = vld [vmem:[#allocation2 + $0x28] sm:$0xff]
    %v627 = vld [vmem:[#allocation2 + $0x30] sm:$0xff]
    %v628 = vld [vmem:[#allocation2 + $0x38] sm:$0xff]
    %v637 = vunpack.c.l.b16 %v621
    %v638 = vunpack.c.h.b16 %v621
    %v639 = vunpack.c.l.b16 %v622
    %v640 = vunpack.c.h.b16 %v622
    %v641 = vunpack.c.l.b16 %v623
    %v642 = vunpack.c.h.b16 %v623
    %v643 = vunpack.c.l.b16 %v624
    %v644 = vunpack.c.h.b16 %v624
    %v645 = vunpack.c.l.b16 %v625
    %v646 = vunpack.c.h.b16 %v625
    %v647 = vunpack.c.l.b16 %v626
    %v648 = vunpack.c.h.b16 %v626
    %v649 = vunpack.c.l.b16 %v627
    %v650 = vunpack.c.h.b16 %v627
    %v651 = vunpack.c.l.b16 %v628
    %v652 = vunpack.c.h.b16 %v628
    %v653 = vpack.c.b16 %v639, %v637
    %v654 = vpack.c.b16 %v640, %v638
    %v655 = vpack.c.b16 %v643, %v641
    %v656 = vpack.c.b16 %v644, %v642
    %v657 = vpack.c.b16 %v647, %v645
    %v658 = vpack.c.b16 %v648, %v646
    %v659 = vpack.c.b16 %v651, %v649
    %v660 = vpack.c.b16 %v652, %v650
    %v666 = vsel %vm430, %v654, 0
    %v669 = vsel %vm430, %v656, 0
    %v672 = vsel %vm430, %v658, 0
    %v675 = vsel %vm430, %v660, 0
    %677 = vmatprep.subr.bf16.mxu0 0
    %678 = vmatpush1.bf16.msra.mxu0 %v376
    %679 = vmatprep.subr.bf16.mxu0 0
    %680 = vmatpush1.bf16.msra.mxu0 %v375
    %681 = vmatprep.subr.bf16.mxu0 0
    %682 = vmatpush1.bf16.msra.mxu0 %v374
    %683 = vmatprep.subr.bf16.mxu0 0
    %684 = vmatpush1.bf16.msra.mxu0 %v373
    %685 = vmatprep.subr.bf16.mxu0 0
    %686 = vmatpush1.bf16.msra.mxu0 %v372
    %687 = vmatprep.subr.bf16.mxu0 0
    %688 = vmatpush1.bf16.msra.mxu0 %v371
    %689 = vmatprep.subr.bf16.mxu0 0
    %690 = vmatpush1.bf16.msra.mxu0 %v370
    %691 = vmatprep.subr.bf16.mxu0 0
    %692 = vmatpush1.bf16.msra.mxu0 %v369
    %693 = vmatprep.subr.bf16.mxu0 0
    %694 = vmatpush2.bf16.msra.mxu0 0
    %695 = vmatprep.subr.bf16.mxu0 0
    %696 = vmatpush2.bf16.msra.mxu0 0
    %697 = vmatprep.subr.bf16.mxu0 0
    %698 = vmatpush2.bf16.msra.mxu0 0
    %699 = vmatprep.subr.bf16.mxu0 0
    %700 = vmatpush2.bf16.msra.mxu0 0
    %701 = vmatprep.subr.bf16.mxu0 0
    %702 = vmatpush2.bf16.msra.mxu0 0
    %703 = vmatprep.subr.bf16.mxu0 0
    %704 = vmatpush2.bf16.msra.mxu0 0
    %705 = vmatprep.subr.bf16.mxu0 0
    %706 = vmatpush2.bf16.msra.mxu0 0
    %707 = vmatprep.subr.bf16.mxu0 0
    %708 = vmatpush2.bf16.msra.mxu0 %v377
    %709 = vmatprep.mubr.bf16.mxu0 %v666
    %710 = vmatmul.mubr.bf16.gmra.mxu0 %v653
    %v711 = vpop.f32.mrf.mxu0
    %v712 = vadd.f32 0.0, %v711
    %v713 = vpop.f32.mrf.mxu0
    %v714 = vpop.f32.mrf.mxu0
    %v715 = vadd.f32 0.0, %v714
    %v716 = vpop.f32.mrf.mxu0
    %717 = vmatprep.mubr.bf16.mxu0 %v669
    %718 = vmatmul.mubr.bf16.gmra.mxu0 %v655
    %v719 = vpop.f32.mrf.mxu0
    %v720 = vadd.f32 0.0, %v719
    %v721 = vpop.f32.mrf.mxu0
    %v722 = vpop.f32.mrf.mxu0
    %v723 = vadd.f32 0.0, %v722
    %v724 = vpop.f32.mrf.mxu0
    %725 = vmatprep.mubr.bf16.mxu0 %v672
    %726 = vmatmul.mubr.bf16.gmra.mxu0 %v657
    %v727 = vpop.f32.mrf.mxu0
    %v728 = vadd.f32 0.0, %v727
    %v729 = vpop.f32.mrf.mxu0
    %v730 = vpop.f32.mrf.mxu0
    %v731 = vadd.f32 0.0, %v730
    %v732 = vpop.f32.mrf.mxu0
    %733 = vmatprep.mubr.bf16.mxu0 %v675
    %734 = vmatmul.mubr.bf16.gmra.mxu0 %v659
    %v735 = vpop.f32.mrf.mxu0
    %v736 = vadd.f32 0.0, %v735
    %v737 = vpop.f32.mrf.mxu0
    %v738 = vpop.f32.mrf.mxu0
    %v739 = vadd.f32 0.0, %v738
    %v740 = vpop.f32.mrf.mxu0
    %741 = vdwg.mxu0
    %v742 = vadd.f32 %v591, %v712
    %v743 = vadd.f32 %v594, %v715
    %v744 = vadd.f32 %v599, %v720
    %v745 = vadd.f32 %v602, %v723
    %v746 = vadd.f32 %v607, %v728
    %v747 = vadd.f32 %v610, %v731
    %v748 = vadd.f32 %v615, %v736
    %v749 = vadd.f32 %v618, %v739
    %v750 = vmax.f32 %v742, 0.0
    %v751 = vmax.f32 %v743, 0.0
    %v752 = vmax.f32 %v744, 0.0
    %v753 = vmax.f32 %v745, 0.0
    %v754 = vmax.f32 %v746, 0.0
    %v755 = vmax.f32 %v747, 0.0
    %v756 = vmax.f32 %v748, 0.0
    %v757 = vmax.f32 %v749, 0.0
    %v758 = vld [vmem:[#allocation4] sm:$0xff]
    %v759 = vld [vmem:[#allocation4 + $0x8] sm:$0xff]
    %v760 = vld [vmem:[#allocation4 + $0x10] sm:$0xff]
    %v761 = vld [vmem:[#allocation4 + $0x18] sm:$0xff]
    %v762 = vld [vmem:[#allocation4 + $0x20] sm:$0xff]
    %v763 = vld [vmem:[%s5] sm:$0xff]
    %v764 = vld [vmem:[%s5 + $0x8] sm:$0xff]
    %v765 = vld [vmem:[%s5 + $0x10] sm:$0xff]
    %v766 = vld [vmem:[%s5 + $0x18] sm:$0xff]
    %v767 = vld [vmem:[%s5 + $0x20] sm:$0xff]
    %769 = vset.pattern.permute.xlu0 0
    %770 = vperm.xlu0 %769, %v763
    %v771 = vpop.permute.xlu0 %770
    %774 = vset.pattern.permute.xlu0 0
    %775 = vperm.xlu0 %774, %v764
    %v776 = vpop.permute.xlu0 %775
    %779 = vset.pattern.permute.xlu0 0
    %780 = vperm.xlu0 %779, %v765
    %v781 = vpop.permute.xlu0 %780
    %784 = vset.pattern.permute.xlu0 0
    %785 = vperm.xlu0 %784, %v766
    %v786 = vpop.permute.xlu0 %785
    %789 = vset.pattern.permute.xlu0 0
    %790 = vperm.xlu0 %789, %v767
    %v791 = vpop.permute.xlu0 %790
    %vm793 = vcmask 523264
    %v795 = vsel %vm793, %v758, 0
    %v798 = vsel %vm793, %v759, 0
    %v801 = vsel %vm793, %v760, 0
    %v804 = vsel %vm793, %v761, 0
    %v807 = vsel %vm793, %v762, 0
    %809 = vmatprep.subr.mxu0 0.0
    %810 = vmatpush1.msra.mxu0 0.0
    %811 = vmatprep.subr.mxu0 0.0
    %812 = vmatpush1.msra.mxu0 0.0
    %813 = vmatprep.subr.mxu0 0.0
    %814 = vmatpush1.msra.mxu0 0.0
    %815 = vmatprep.subr.mxu0 0.0
    %816 = vmatpush1.msra.mxu0 0.0
    %817 = vmatprep.subr.mxu0 0.0
    %818 = vmatpush1.msra.mxu0 0.0
    %819 = vmatprep.subr.mxu0 0.0
    %820 = vmatpush1.msra.mxu0 0.0
    %821 = vmatprep.subr.mxu0 0.0
    %822 = vmatpush1.msra.mxu0 0.0
    %823 = vmatprep.subr.mxu0 0.0
    %824 = vmatpush1.msra.mxu0 0.0
    %825 = vmatprep.subr.mxu0 0.0
    %826 = vmatpush1.msra.mxu0 %v757
    %827 = vmatprep.subr.mxu0 0.0
    %828 = vmatpush1.msra.mxu0 %v756
    %829 = vmatprep.subr.mxu0 0.0
    %830 = vmatpush1.msra.mxu0 %v755
    %831 = vmatprep.subr.mxu0 0.0
    %832 = vmatpush1.msra.mxu0 %v754
    %833 = vmatprep.subr.mxu0 0.0
    %834 = vmatpush1.msra.mxu0 %v753
    %835 = vmatprep.subr.mxu0 0.0
    %836 = vmatpush1.msra.mxu0 %v752
    %837 = vmatprep.subr.mxu0 0.0
    %838 = vmatpush1.msra.mxu0 %v751
    %839 = vmatprep.subr.mxu0 0.0
    %840 = vmatpush1.msra.mxu0 %v750
    %841 = vmatprep.subr.mxu0 0.0
    %842 = vmatpush2.msra.mxu0 0.0
    %843 = vmatprep.subr.mxu0 0.0
    %844 = vmatpush2.msra.mxu0 0.0
    %845 = vmatprep.subr.mxu0 0.0
    %846 = vmatpush2.msra.mxu0 0.0
    %847 = vmatprep.subr.mxu0 0.0
    %848 = vmatpush2.msra.mxu0 0.0
    %849 = vmatprep.subr.mxu0 0.0
    %850 = vmatpush2.msra.mxu0 0.0
    %851 = vmatprep.subr.mxu0 0.0
    %852 = vmatpush2.msra.mxu0 0.0
    %853 = vmatprep.subr.mxu0 0.0
    %854 = vmatpush2.msra.mxu0 0.0
    %855 = vmatprep.subr.mxu0 0.0
    %856 = vmatpush2.msra.mxu0 0.0
    %857 = vmatprep.subr.mxu0 0.0
    %858 = vmatpush2.msra.mxu0 0.0
    %859 = vmatprep.subr.mxu0 0.0
    %860 = vmatpush2.msra.mxu0 0.0
    %861 = vmatprep.subr.mxu0 0.0
    %862 = vmatpush2.msra.mxu0 0.0
    %863 = vmatprep.subr.mxu0 0.0
    %864 = vmatpush2.msra.mxu0 0.0
    %865 = vmatprep.subr.mxu0 0.0
    %866 = vmatpush2.msra.mxu0 0.0
    %867 = vmatprep.subr.mxu0 0.0
    %868 = vmatpush2.msra.mxu0 0.0
    %869 = vmatprep.subr.mxu0 0.0
    %870 = vmatpush2.msra.mxu0 0.0
    %871 = vmatprep.subr.mxu0 0.0
    %872 = vmatpush2.msra.mxu0 0.0
    %873 = vmatprep.mubr.f32.mxu0 0.0
    %874 = vmatmul.mubr.f32.gmra.mxu0 %v795
    %v875 = vpop.f32.mrf.mxu0
    %v876 = vadd.f32 %v771, %v875
    %v877 = vpop.f32.mrf.mxu0
    %878 = vmatprep.mubr.f32.mxu0 0.0
    %879 = vmatmul.mubr.f32.gmra.mxu0 %v798
    %v880 = vpop.f32.mrf.mxu0
    %v881 = vadd.f32 %v776, %v880
    %v882 = vpop.f32.mrf.mxu0
    %883 = vmatprep.mubr.f32.mxu0 0.0
    %884 = vmatmul.mubr.f32.gmra.mxu0 %v801
    %v885 = vpop.f32.mrf.mxu0
    %v886 = vadd.f32 %v781, %v885
    %v887 = vpop.f32.mrf.mxu0
    %888 = vmatprep.mubr.f32.mxu0 0.0
    %889 = vmatmul.mubr.f32.gmra.mxu0 %v804
    %v890 = vpop.f32.mrf.mxu0
    %v891 = vadd.f32 %v786, %v890
    %v892 = vpop.f32.mrf.mxu0
    %893 = vmatprep.mubr.f32.mxu0 0.0
    %894 = vmatmul.mubr.f32.gmra.mxu0 %v807
    %v895 = vpop.f32.mrf.mxu0
    %v896 = vadd.f32 %v791, %v895
    %v897 = vpop.f32.mrf.mxu0
    %898 = vdwg.mxu0
    %v899 = vmax.f32 %v876, 0.0
    %v900 = vmax.f32 %v881, 0.0
    %v901 = vmax.f32 %v886, 0.0
    %v902 = vmax.f32 %v891, 0.0
    %v903 = vmax.f32 %v896, 0.0
    %v904 = vld [vmem:[%s6] sm:$0xff]
    %v905 = vld [vmem:[%s6 + $0x8] sm:$0xff]
    %v906 = vld [vmem:[%s6 + $0x10] sm:$0xff]
    %v907 = vld [vmem:[%s6 + $0x18] sm:$0xff]
    %v908 = vld [vmem:[%s6 + $0x20] sm:$0xff]
    %910 = vset.pattern.permute.xlu0 0
    %911 = vperm.xlu0 %910, %v904
    %v912 = vpop.permute.xlu0 %911
    %915 = vset.pattern.permute.xlu0 0
    %916 = vperm.xlu0 %915, %v905
    %v917 = vpop.permute.xlu0 %916
    %920 = vset.pattern.permute.xlu0 0
    %921 = vperm.xlu0 %920, %v906
    %v922 = vpop.permute.xlu0 %921
    %925 = vset.pattern.permute.xlu0 0
    %926 = vperm.xlu0 %925, %v907
    %v927 = vpop.permute.xlu0 %926
    %930 = vset.pattern.permute.xlu0 0
    %931 = vperm.xlu0 %930, %v908
    %v932 = vpop.permute.xlu0 %931
    %v934 = vmul.f32 %v899, %v912
    %v935 = vmul.f32 %v900, %v917
    %v936 = vmul.f32 %v901, %v922
    %v937 = vmul.f32 %v902, %v927
    %v938 = vmul.f32 %v903, %v932
    %v939 = vadd.f32 %v934, %v935
    %v940 = vadd.f32 %v939, %v936
    %v941 = vadd.f32 %v940, %v937
    %v942 = vadd.f32 %v941, %v938
    %v943 = vrot.slane %v942, 4
    %v944 = vadd.f32 %v942, %v943
    %v945 = vrot.slane %v944, 2
    %v946 = vadd.f32 %v944, %v945
    %v947 = vrot.slane %v946, 1
    %v948 = vadd.f32 %v946, %v947
    %v949 = vxor.u32 %v948, 2147483648
    %v950 = vmul.f32 %v949, 1.442695
    %v951 = vpow.pop %v950
    %v952 = vadd.f32 %v951, 1.0
    %v953 = vrcp.pop %v952
    %v954 = vmul.f32 1.0, %v953
    %955 = vst [vmem:[%s7] sm:$0x1] %v954
    // Predicated region
    $region38: #{ncf_forward.1} parent=1 // pred_check
      _
    $region39: #{ncf_forward.1} parent=1 // pred_check_branch
      %957 = sbr.rel (0) target = $region41
    $region40: #{ncf_forward.1} parent=1 // pred_region
      _
    $region41: #{ncf_forward.1} parent=1 // pred_fallthru
      _
    // Predicated region
    $region42: #{ncf_forward.1} parent=1 // pred_check
      _
    $region43: #{ncf_forward.1} parent=1 // pred_check_branch
      %959 = sbr.rel (0) target = $region45
    $region44: #{ncf_forward.1} parent=1 // pred_region
      _
    $region45: #{ncf_forward.1} parent=1 // pred_fallthru
      _
    %960 = vsyncpa [#allocation3], 1
    %961 = vsyncpa [#allocation5], 1

</llo_original>
